<compile_context>
chip_gen: v7x
topology: tpu7x:2x2x1
jax: 0.10.0
libtpu: 0.0.40
codegen_flags: <defaults>
</compile_context>

<pallas_src>
import jax
import jax.numpy as jnp
from jax.experimental import pallas as pl
from jax.experimental.pallas import tpu as pltpu


def _fnorm_kernel(x_ref, o_ref, acc_ref):
    # x_ref : (1, tK, tW) block of the (B, C*H, W) view
    # o_ref : (1, 1, tW)  output block (same block for every k step)
    # acc_ref: (8, tW) f32 accumulator scratch (persists across k steps)
    k = pl.program_id(2)

    @pl.when(k == 0)
    def _init():
        acc_ref[...] = jnp.zeros_like(acc_ref)

    x = x_ref[0].astype(jnp.float32)            # (tK, tW)
    sq = x * x
    tK, tW = sq.shape
    if tK % 8 == 0:
        # Fold the reduction tile down to one vreg-row group (8 sublanes) with
        # pure elementwise adds (VALU); defer the 8->1 reduce to finalize.
        part = sq[0:8, :]
        for g in range(1, tK // 8):
            part = part + sq[g * 8:(g + 1) * 8, :]
        acc_ref[...] += part
    else:
        # Odd reduction widths (C*H not a multiple of 8): plain sublane reduce.
        acc_ref[0:1, :] += jnp.sum(sq, axis=0, keepdims=True)

    @pl.when(k == pl.num_programs(2) - 1)
    def _finalize():
        total = jnp.sum(acc_ref[...], axis=0, keepdims=True)   # (1, tW)
        o_ref[0] = jnp.sqrt(total).astype(o_ref.dtype)


def _pick_tile(dim: int, unit: int, max_tile: int) -> int:
    """Largest multiple of `unit` dividing `dim`, capped at `max_tile`;
    falls back to the full dim (full-extent blocks are exempt from the
    (8,128) divisibility rule)."""
    if dim % unit != 0:
        return dim
    t = min(max_tile, dim)
    t -= t % unit
    while t > 0 and dim % t != 0:
        t -= unit
    return t if t > 0 else dim


def fnorm(x: jax.Array) -> jax.Array:
    """L2 norm over dims (1, 2) of a (B, C, H, W) array -> (B, W), x.dtype."""
    B, C, H, W = x.shape
    K = C * H
    # Reshape-only view (contiguous merge of C and H): no HBM data movement.
    x3d = x.reshape(B, K, W)

    tK = _pick_tile(K, 8, 512)      # reduction tile (sublane axis)
    tW = _pick_tile(W, 128, 512)    # kept-index tile (lane axis)
    grid = (B, W // tW, K // tK)    # reduction axis last

    out_dtype = x.dtype
    cost = pl.CostEstimate(
        flops=2 * B * C * H * W,
        transcendentals=B * W,
        bytes_accessed=B * C * H * W * jnp.dtype(x.dtype).itemsize
        + B * W * jnp.dtype(out_dtype).itemsize,
    )

    out3d = pl.pallas_call(
        _fnorm_kernel,
        out_shape=jax.ShapeDtypeStruct((B, 1, W), out_dtype),
        grid_spec=pltpu.PrefetchScalarGridSpec(
            num_scalar_prefetch=0,
            grid=grid,
            in_specs=[pl.BlockSpec((1, tK, tW), lambda b, j, k: (b, k, j))],
            out_specs=pl.BlockSpec((1, 1, tW), lambda b, j, k: (b, 0, j)),
            scratch_shapes=[pltpu.VMEM((8, tW), jnp.float32)],
        ),
        compiler_params=pltpu.CompilerParams(
            dimension_semantics=("parallel", "parallel", "arbitrary"),
        ),
        cost_estimate=cost,
    )(x3d)

    return out3d.reshape(B, W)


if __name__ == "__main__":
    key = jax.random.PRNGKey(0)
    # Small NCHW input consistent with the module's forward.
    x = jax.random.normal(key, (2, 4, 16, 16), dtype=jnp.float32)

    out = fnorm(x)
    out = jax.block_until_ready(out)

    # Reference check (same math as torch.norm(p=2, dim=[1, 2])).
    ref = jnp.sqrt(jnp.sum(x.astype(jnp.float32) ** 2, axis=(1, 2)))
    assert out.shape == (2, 16), out.shape
    assert out.dtype == x.dtype, out.dtype
    assert jnp.allclose(out.astype(jnp.float32), ref, atol=1e-5, rtol=1e-5), \
        "mismatch vs reference"

    print("KERNEL_OK")
</pallas_src>

<mosaic_0001>
module attributes {stable_mosaic.version = 11 : i64} {
  func.func @_fnorm_kernel(%arg0: i32, %arg1: i32, %arg2: i32, %arg3: memref<1x64x16xf32, #tpu.memory_space<vmem>>, %arg4: memref<1x1x16xf32, #tpu.memory_space<vmem>>, %arg5: memref<8x16xf32, #tpu.memory_space<vmem>>) attributes {dimension_semantics = [#tpu.dimension_semantics<parallel>, #tpu.dimension_semantics<parallel>, #tpu.dimension_semantics<arbitrary>], iteration_bounds = array<i64: 2, 1, 1>, scalar_prefetch = 0 : i64, scratch_operands = 1 : i64, tpu.core_type = #tpu.core_type<tc>, window_params = [{transform_indices = @transform_0, window_bounds = array<i64: 1, 64, 16>}, {transform_indices = @transform_1, window_bounds = array<i64: 1, 1, 16>}]} {
    %c0_i32 = arith.constant 0 : i32
    %0 = arith.cmpi eq, %arg2, %c0_i32 : i32
    %1 = arith.extui %0 : i1 to i32
    %c0_i32_0 = arith.constant 0 : i32
    %2 = arith.cmpi ne, %1, %c0_i32_0 : i32
    scf.if %2 {
      %cst = arith.constant 0.000000e+00 : f32
      %27 = vector.broadcast %cst : f32 to vector<8x16xf32>
      %c0_9 = arith.constant 0 : index
      %c0_10 = arith.constant 0 : index
      %28 = vector.load %arg5[%c0_9, %c0_10] : memref<8x16xf32, #tpu.memory_space<vmem>>, vector<8x16xf32>
      tpu.vector_store %arg5[%c0_9, %c0_10], %27 {strides = array<i32>} : memref<8x16xf32, #tpu.memory_space<vmem>>, vector<8x16xf32>,
    } else {
    }
    %c0 = arith.constant 0 : index
    %c0_1 = arith.constant 0 : index
    %c0_2 = arith.constant 0 : index
    %3 = vector.load %arg3[%c0, %c0_1, %c0_2] : memref<1x64x16xf32, #tpu.memory_space<vmem>>, vector<1x64x16xf32>
    %4 = vector.shape_cast %3 : vector<1x64x16xf32> to vector<64x16xf32>
    %5 = arith.mulf %4, %4 : vector<64x16xf32>
    %6 = vector.extract_strided_slice %5 {offsets = [0, 0], sizes = [8, 16], strides = [1, 1]} : vector<64x16xf32> to vector<8x16xf32>
    %7 = vector.extract_strided_slice %5 {offsets = [8, 0], sizes = [8, 16], strides = [1, 1]} : vector<64x16xf32> to vector<8x16xf32>
    %8 = arith.addf %6, %7 : vector<8x16xf32>
    %9 = vector.extract_strided_slice %5 {offsets = [16, 0], sizes = [8, 16], strides = [1, 1]} : vector<64x16xf32> to vector<8x16xf32>
    %10 = arith.addf %8, %9 : vector<8x16xf32>
    %11 = vector.extract_strided_slice %5 {offsets = [24, 0], sizes = [8, 16], strides = [1, 1]} : vector<64x16xf32> to vector<8x16xf32>
    %12 = arith.addf %10, %11 : vector<8x16xf32>
    %13 = vector.extract_strided_slice %5 {offsets = [32, 0], sizes = [8, 16], strides = [1, 1]} : vector<64x16xf32> to vector<8x16xf32>
    %14 = arith.addf %12, %13 : vector<8x16xf32>
    %15 = vector.extract_strided_slice %5 {offsets = [40, 0], sizes = [8, 16], strides = [1, 1]} : vector<64x16xf32> to vector<8x16xf32>
    %16 = arith.addf %14, %15 : vector<8x16xf32>
    %17 = vector.extract_strided_slice %5 {offsets = [48, 0], sizes = [8, 16], strides = [1, 1]} : vector<64x16xf32> to vector<8x16xf32>
    %18 = arith.addf %16, %17 : vector<8x16xf32>
    %19 = vector.extract_strided_slice %5 {offsets = [56, 0], sizes = [8, 16], strides = [1, 1]} : vector<64x16xf32> to vector<8x16xf32>
    %20 = arith.addf %18, %19 : vector<8x16xf32>
    %c0_3 = arith.constant 0 : index
    %c0_4 = arith.constant 0 : index
    %21 = vector.load %arg5[%c0_3, %c0_4] : memref<8x16xf32, #tpu.memory_space<vmem>>, vector<8x16xf32>
    %22 = arith.addf %21, %20 : vector<8x16xf32>
    %c0_5 = arith.constant 0 : index
    %c0_6 = arith.constant 0 : index
    %23 = vector.load %arg5[%c0_5, %c0_6] : memref<8x16xf32, #tpu.memory_space<vmem>>, vector<8x16xf32>
    tpu.vector_store %arg5[%c0_5, %c0_6], %22 {strides = array<i32>} : memref<8x16xf32, #tpu.memory_space<vmem>>, vector<8x16xf32>,
    %c0_i32_7 = arith.constant 0 : i32
    %24 = arith.cmpi eq, %arg2, %c0_i32_7 : i32
    %25 = arith.extui %24 : i1 to i32
    %c0_i32_8 = arith.constant 0 : i32
    %26 = arith.cmpi ne, %25, %c0_i32_8 : i32
    scf.if %26 {
      %c0_9 = arith.constant 0 : index
      %c0_10 = arith.constant 0 : index
      %27 = vector.load %arg5[%c0_9, %c0_10] : memref<8x16xf32, #tpu.memory_space<vmem>>, vector<8x16xf32>
      %cst = arith.constant dense<0.000000e+00> : vector<16xf32>
      %28 = vector.multi_reduction <add>, %27, %cst [0] : vector<8x16xf32> to vector<16xf32>
      %29 = vector.shape_cast %28 : vector<16xf32> to vector<1x16xf32>
      %30 = math.sqrt %29 : vector<1x16xf32>
      %c0_11 = arith.constant 0 : index
      %c0_12 = arith.constant 0 : index
      %c0_13 = arith.constant 0 : index
      %31 = vector.load %arg4[%c0_11, %c0_12, %c0_13] : memref<1x1x16xf32, #tpu.memory_space<vmem>>, vector<1x1x16xf32>
      %32 = vector.shape_cast %31 : vector<1x1x16xf32> to vector<1x16xf32>
      %33 = vector.shape_cast %30 : vector<1x16xf32> to vector<1x1x16xf32>
      tpu.vector_store %arg4[%c0_11, %c0_12, %c0_13], %33 {strides = array<i32>} : memref<1x1x16xf32, #tpu.memory_space<vmem>>, vector<1x1x16xf32>,
    } else {
    }
    return
  }
  func.func @transform_0(%arg0: i32, %arg1: i32, %arg2: i32) -> (i32, i32, i32) {
    %c0_i32 = arith.constant 0 : i32
    return %arg0, %arg2, %arg1 : i32, i32, i32
  }
  func.func @transform_1(%arg0: i32, %arg1: i32, %arg2: i32) -> (i32, i32, i32) {
    %c0_i32 = arith.constant 0 : i32
    %c0_i32_0 = arith.constant 0 : i32
    return %arg0, %c0_i32, %arg1 : i32, i32, i32
  }
}

</mosaic_0001>

<llo_original>
// kernel: tpu_custom_call.1
$region0: #{tpu_custom_call.1}
  #allocation0 [shape = 'u32[]', space=smem, size = 0x4, offset = 0x4, fixed_abs, tag = 'smem constant byte address 0x4 - core index']
  #allocation1 [shape = 'u32[144,128]{1,0:T(1,128)}', space=vmem, size = 0x12000, scoped, tag = 'internal scratch']
  #allocation2 [shape = 'f32[8,16]{1,0:T(8,128)}', space=vmem, size = 0x1000, scoped, tag = 'scratch operand']
  %s0 = inlined_call_operand.vmem [shape: f32[2,64,16], index: 0, kind: input, shape index: {}]
  %s1 = inlined_call_operand.hbm [shape: f32[2,1,16], index: 1, kind: output, shape index: {}]
  %s2 = sld [smem:[#allocation0]]
  $region45: #{tpu_custom_call.1} parent=0
    _
  %s4 = ssub.s32 1, %s2
  %s5 = scalar_select 0, %s4, %s2
  $region1: #{tpu_custom_call.1} parent=0
    #allocation3 [shape = 'u8[1024]{0}', space=vmem, size = 0x400, scoped, tag = 'output window, operand 0']
    #allocation4 [shape = 's32[2]{0}', space=sflag, size = 0x8, scoped, tag = 'scoped memory for tpu_custom_call.1']
    %6 = vsyncpa [#allocation4], 0
    %s7 = scalar_lea.sflag [#allocation4], 1
    %8 = vsyncpa %s7, 0
    loop: start=0, step=1, limit=4
    $region2: #{tpu_custom_call.1} parent=1 // loop_pre_header
      _
    $region3: #{tpu_custom_call.1} parent=1 // loop_header
      %s10 = sphi 0, %s14
      %p11 = scmp.ge.s32.totalorder %s10, 4
      %s17 = sphi 0, %s36
      %s18 = sphi 0, %s32
      %s19 = sphi 0, %s28
      %s20 = sphi 0, %s17
      %s21 = sphi 0, %s18
      %s22 = sphi 0, %s19
      %s23 = sphi 0, %s20
      %s24 = sphi 0, %s21
      %s25 = sphi 0, %s22
      %s43 = sphi 0, %s45
      %s46 = sphi 0, %s43
      %s47 = sphi 0, %s46
      %s63 = sphi 0, %s47
      %s71 = sphi 0, %s73
      %s74 = sphi 0, %s71
      %s75 = sphi 0, %s74
      %s91 = sphi 0, %s75
    $region4: #{tpu_custom_call.1} parent=1 // loop_header_branch
      %13 = sbr.rel (%p11) target = $region8
    $region5: #{tpu_custom_call.1} parent=1 // loop_body
      %s15 = ssub.s32 %s10, 1
      %s16 = ssub.s32 %s10, 2
      %s26 = sadd.s32 1, %s19
      %p27 = scmp.ge.s32.totalorder %s26, 1
      %s28 = scalar_select %p27, 0, %s26
      %s29 = sadd.s32 1, %s18
      %s30 = scalar_select %p27, %s29, %s18
      %p31 = scmp.ge.s32.totalorder %s30, 1
      %s32 = scalar_select %p31, 0, %s30
      %s33 = sadd.s32 1, %s17
      %s34 = scalar_select %p31, %s33, %s17
      %p35 = scmp.ge.s32.totalorder %s34, 2
      %s36 = scalar_select %p35, 0, %s34
      %s37 = ssub.s32 %s17, %s36
      %s38 = ssub.s32 %s19, %s28
      %s39 = sor.u32 %s37, %s38
      %s40 = ssub.s32 %s18, %s32
      %s41 = sor.u32 %s39, %s40
      %p42 = scmp.eq.s32.totalorder %s41, 0
      %s44 = sadd.s32 %s43, 1
      %s45 = scalar_select %p42, %s43, %s44
      %p48 = pneg %p42
      %p49 = scmp.eq.s32.totalorder %s10, 1
      %p50 = por %p48, %p49
      %p51 = scmp.ne.s32.totalorder %s43, %s46
      %p52 = scmp.eq.s32.totalorder %s10, 0
      %p53 = por %p51, %p52
      %p54 = scmp.ne.s32.totalorder %s43, %s46
      %p55 = scmp.eq.s32.totalorder %s15, 1
      %p56 = por %p54, %p55
      %p57 = scmp.ne.s32.totalorder %s46, %s47
      %p58 = scmp.eq.s32.totalorder %s15, 0
      %p59 = por %p57, %p58
      %p60 = scmp.ne.s32.totalorder %s46, %s47
      %p61 = scmp.eq.s32.totalorder %s16, 1
      %p62 = por %p60, %p61
      %p64 = scmp.ne.s32.totalorder %s47, %s63
      %p65 = scmp.eq.s32.totalorder %s16, 0
      %p66 = por %p64, %p65
      %s67 = ssub.s32 %s17, %s36
      %s68 = ssub.s32 %s18, %s32
      %s69 = sor.u32 %s67, %s68
      %p70 = scmp.eq.s32.totalorder %s69, 0
      %s72 = sadd.s32 %s71, 1
      %s73 = scalar_select %p70, %s71, %s72
      %p76 = pneg %p70
      %p77 = scmp.eq.s32.totalorder %s10, 1
      %p78 = por %p76, %p77
      %p79 = scmp.ne.s32.totalorder %s71, %s74
      %p80 = scmp.eq.s32.totalorder %s10, 0
      %p81 = por %p79, %p80
      %p82 = scmp.ne.s32.totalorder %s71, %s74
      %p83 = scmp.eq.s32.totalorder %s15, 1
      %p84 = por %p82, %p83
      %p85 = scmp.ne.s32.totalorder %s74, %s75
      %p86 = scmp.eq.s32.totalorder %s15, 0
      %p87 = por %p85, %p86
      %p88 = scmp.ne.s32.totalorder %s74, %s75
      %p89 = scmp.eq.s32.totalorder %s16, 1
      %p90 = por %p88, %p89
      %p92 = scmp.ne.s32.totalorder %s75, %s91
      %p93 = scmp.eq.s32.totalorder %s16, 0
      %p94 = por %p92, %p93
      %p95 = scmp.le.s32.totalorder 1, %s10
      %p96 = scmp.lt.s32.totalorder %s10, 3
      %p97 = pnand %p95, %p96
      %p98 = pneg %p97
      // Predicated region
      $region9: #{tpu_custom_call.1} parent=5 // pred_check
        _
      $region10: #{tpu_custom_call.1} parent=5 // pred_check_branch
        %100 = sbr.rel (%p97) target = $region12
      $region11: #{tpu_custom_call.1} parent=5 // pred_region
        %s101 = ssub.s32 %s10, 1
      $region12: #{tpu_custom_call.1} parent=5 // pred_fallthru
        _
      %p102 = scmp.lt.s32.totalorder %s10, 2
      // Predicated region
      $region13: #{tpu_custom_call.1} parent=5 // pred_check
        %p103 = pneg %p102
      $region14: #{tpu_custom_call.1} parent=5 // pred_check_branch
        %105 = sbr.rel (%p103) target = $region16
      $region15: #{tpu_custom_call.1} parent=5 // pred_region
        // Predicated region
        $region17: #{tpu_custom_call.1} parent=15 // pred_check
          %p106 = pneg %p53
        $region18: #{tpu_custom_call.1} parent=15 // pred_check_branch
          %108 = sbr.rel (%p106) target = $region20
        $region19: #{tpu_custom_call.1} parent=15 // pred_region
          %s109 = smul.u32 8, %s19
          %p110 = scmp.lt.s32.totalorder %s17, 1
          %s111 = scalar_select %p110, %s17, 1
          %p112 = scmp.lt.s32.totalorder %s109, 7
          %s113 = scalar_select %p112, %s109, 7
          %p114 = scmp.lt.s32.totalorder %s18, 0
          %s115 = scalar_select %p114, %s18, 0
          %s116 = sadd.s32 %s115, %s113
          %s117 = smul.addr %s111, 8
          %s118 = sadd.s32 %s116, %s117
          %s119 = smul.addr %s118, 8
          %s120 = scalar_lea.vmem %s0, %s119
          %s121 = smul.u32 8, %s19
        $region20: #{tpu_custom_call.1} parent=15 // pred_fallthru
          _
      $region16: #{tpu_custom_call.1} parent=5 // pred_fallthru
        _
      %p122 = scmp.le.s32.totalorder 1, %s10
      %p123 = scmp.lt.s32.totalorder %s10, 3
      %p124 = pnand %p122, %p123
      %p125 = pneg %p124
      // Predicated region
      $region21: #{tpu_custom_call.1} parent=5 // pred_check
        _
      $region22: #{tpu_custom_call.1} parent=5 // pred_check_branch
        %127 = sbr.rel (%p124) target = $region24
      $region23: #{tpu_custom_call.1} parent=5 // pred_region
        %s128 = ssub.s32 %s10, 1
        %s129 = smul.u32 8, %s22
        %p130 = scmp.lt.s32.totalorder %s20, 1
        %s131 = scalar_select %p130, %s20, 1
        %p132 = scmp.lt.s32.totalorder %s129, 7
        %s133 = scalar_select %p132, %s129, 7
        %p134 = scmp.lt.s32.totalorder %s21, 0
        %s135 = scalar_select %p134, %s21, 0
        %s136 = sadd.s32 %s135, %s133
        %s137 = smul.addr %s131, 8
        %s138 = sadd.s32 %s136, %s137
        %s139 = smul.addr %s138, 8
        %s140 = scalar_lea.vmem %s0, %s139
        %p141 = pneg %p59
        %p142 = pneg %p56
        %p143 = pneg %p87
        %p144 = pneg %p84
        %s145 = sand.u32 %s74, 1
        %s146 = scalar_lea.sflag [#allocation4], %s145
        %s147 = sand.u32 %s74, 1
        %s148 = scalar_lea.vmem [#allocation3], %s147
        %s149 = smul.u32 8, %s22
        %p150 = scmp.lt.s32.totalorder %s20, 1
        %s151 = scalar_select %p150, %s20, 1
        %p152 = scmp.lt.s32.totalorder %s149, 7
        %s153 = scalar_select %p152, %s149, 7
        %p154 = scmp.lt.s32.totalorder %s21, 0
        %s155 = scalar_select %p154, %s21, 0
        %s156 = sadd.s32 %s155, %s153
        %s157 = smul.addr %s151, 8
        %s158 = sadd.s32 %s156, %s157
        %s159 = smul.addr %s158, 8
        %s160 = scalar_lea.vmem %s0, %s159
        %s161 = smul.u32 8, %s22
        %p162 = scmp.eq.s32.totalorder %s22, 0
        // Predicated region
        $region25: #{tpu_custom_call.1} parent=23 // pred_check
          %p163 = pneg %p162
        $region26: #{tpu_custom_call.1} parent=23 // pred_check_branch
          %165 = sbr.rel (%p163) target = $region28
        $region27: #{tpu_custom_call.1} parent=23 // pred_region
          %vm166 = vcmask 130048
          %167 = vst.msk [vmem:[#allocation2] sm:$0xff] %vm166, 0.0
        $region28: #{tpu_custom_call.1} parent=23 // pred_fallthru
          _
        %v168 = vld [vmem:[%s160] sm:$0xff]
        %v169 = vld [vmem:[%s160 + $0x8] sm:$0xff]
        %v170 = vld [vmem:[%s160 + $0x10] sm:$0xff]
        %v171 = vld [vmem:[%s160 + $0x18] sm:$0xff]
        %v172 = vld [vmem:[%s160 + $0x20] sm:$0xff]
        %v173 = vld [vmem:[%s160 + $0x28] sm:$0xff]
        %v174 = vld [vmem:[%s160 + $0x30] sm:$0xff]
        %v175 = vld [vmem:[%s160 + $0x38] sm:$0xff]
        %v176 = vmul.f32 %v168, %v168
        %v177 = vmul.f32 %v169, %v169
        %v178 = vmul.f32 %v170, %v170
        %v179 = vmul.f32 %v171, %v171
        %v180 = vmul.f32 %v172, %v172
        %v181 = vmul.f32 %v173, %v173
        %v182 = vmul.f32 %v174, %v174
        %v183 = vmul.f32 %v175, %v175
        %v184 = vadd.f32 %v176, %v177
        %v185 = vadd.f32 %v184, %v178
        %v186 = vadd.f32 %v185, %v179
        %v187 = vadd.f32 %v186, %v180
        %v188 = vadd.f32 %v187, %v181
        %v189 = vadd.f32 %v188, %v182
        %v190 = vadd.f32 %v189, %v183
        %v191 = vld [vmem:[#allocation2] sm:$0xff]
        %v192 = vadd.f32 %v191, %v190
        %vm193 = vcmask 130048
        %194 = vst.msk [vmem:[#allocation2] sm:$0xff] %vm193, %v192
        // Predicated region
        $region29: #{tpu_custom_call.1} parent=23 // pred_check
          %p195 = pneg %p162
        $region30: #{tpu_custom_call.1} parent=23 // pred_check_branch
          %197 = sbr.rel (%p195) target = $region32
        $region31: #{tpu_custom_call.1} parent=23 // pred_region
          %v198 = vld [vmem:[#allocation2] sm:$0xff]
          %v199 = vsel %vm193, %v198, 0.0
          %v200 = vrot.slane %v199, 4
          %v201 = vadd.f32 %v199, %v200
          %v202 = vrot.slane %v201, 2
          %v203 = vadd.f32 %v201, %v202
          %v204 = vrot.slane %v203, 1
          %v205 = vadd.f32 %v203, %v204
          %v206 = vrsqrt.pop %v205
          %v207 = vmul.f32 %v205, %v206
          %vm208 = vcmp.eq.f32.partialorder %v205, inf
          %v209 = vsel %vm208, %v205, %v207
          %vm210 = vcmp.eq.f32.partialorder %v205, 0.0
          %v211 = vand.u32 %v205, 2147483648
          %v212 = vsel %vm210, %v211, %v209
          %vm213 = vcmask 122880
          %214 = vst.msk [vmem:[%s148] sm:$0x1] %vm213, %v212
        $region32: #{tpu_custom_call.1} parent=23 // pred_fallthru
          _
        %s215 = sand.u32 %s74, 1
        %s216 = scalar_lea.sflag [#allocation4], %s215
        %s217 = sand.u32 %s74, 1
        %s218 = scalar_lea.vmem [#allocation3], %s217
        // Predicated region
        $region33: #{tpu_custom_call.1} parent=23 // pred_check
          %p219 = pneg %p84
        $region34: #{tpu_custom_call.1} parent=23 // pred_check_branch
          %221 = sbr.rel (%p219) target = $region36
        $region35: #{tpu_custom_call.1} parent=23 // pred_region
          %s223 = ssub.s32 16, 16
          %224 = vsyncadd %s216, %s223
          %s225 = sadd.s32 %s21, %s20
          %s226 = smul.addr %s225, 16
          %s227 = scalar_lea.hbm %s1, %s226
          %s229 = sshll.u32 %s218, 4
          %s230 = int_to_ptr.vmem [resolvable:$true] %s229
          %232 = dma.vmem_to_hbm [thread:$0]  %s230, 16, %s227, %s216
        $region36: #{tpu_custom_call.1} parent=23 // pred_fallthru
          _
      $region24: #{tpu_custom_call.1} parent=5 // pred_fallthru
        _
      %p233 = scmp.le.s32.totalorder 2, %s10
      // Predicated region
      $region37: #{tpu_custom_call.1} parent=5 // pred_check
        %p234 = pneg %p233
      $region38: #{tpu_custom_call.1} parent=5 // pred_check_branch
        %236 = sbr.rel (%p234) target = $region40
      $region39: #{tpu_custom_call.1} parent=5 // pred_region
        %s237 = ssub.s32 %s10, 2
        // Predicated region
        $region41: #{tpu_custom_call.1} parent=39 // pred_check
          %p238 = pneg %p90
        $region42: #{tpu_custom_call.1} parent=39 // pred_check_branch
          %240 = sbr.rel (%p238) target = $region44
        $region43: #{tpu_custom_call.1} parent=39 // pred_region
          %s241 = sand.u32 %s75, 1
          %s242 = scalar_lea.sflag [#allocation4], %s241
          %s243 = sand.u32 %s75, 1
          %s244 = scalar_lea.vmem [#allocation3], %s243
          %245 = dma.done %s242, 16
        $region44: #{tpu_custom_call.1} parent=39 // pred_fallthru
          _
      $region40: #{tpu_custom_call.1} parent=5 // pred_fallthru
        _
    $region6: #{tpu_custom_call.1} parent=1 // loop_footer
      %s14 = sadd.s32 1, %s10
    $region7: #{tpu_custom_call.1} parent=1 // loop_footer_branch
      %9 = sbr.rel target = $region3
    $region8: #{tpu_custom_call.1} parent=1 // loop_exit
      _
    %246 = vsyncpa [#allocation4], 1
    %s247 = scalar_lea.sflag [#allocation4], 1
    %248 = vsyncpa %s247, 1

</llo_original>
